<compile_context>
chip_gen: v7x
topology: tpu7x:2x2x1
jax: 0.10.0
libtpu: 0.0.40
codegen_flags: <defaults>
</compile_context>

<pallas_src>
import functools

import jax
import jax.numpy as jnp
from jax.experimental import pallas as pl
from jax.experimental.pallas import tpu as pltpu  # noqa: F401  (TPU backend)


def _distill_soft_kernel(alpha, tau, s_ref, d_ref, t_ref, lab_ref,
                         loss_ref, base_ref, dist_ref):
    """alpha, tau are static Python floats (bound via functools.partial)."""
    B, C = s_ref.shape
    s = s_ref[...]            # student cls-token logits   (B, C)
    d = d_ref[...]            # student dist-token logits  (B, C)
    t = t_ref[...]            # teacher logits             (B, C)
    lab = lab_ref[...]        # int32 labels               (B, 1)

    # ---- base criterion: cross-entropy(outputs, labels), mean over batch -----
    # (== SoftTargetCrossEntropy on one-hot labels, i.e. the module's except-path)
    m_s = jnp.max(s, axis=-1, keepdims=True)
    log_p = s - (m_s + jnp.log(jnp.sum(jnp.exp(s - m_s), axis=-1, keepdims=True)))
    class_ids = jax.lax.broadcasted_iota(jnp.int32, (B, C), 1)
    one_hot = (class_ids == lab).astype(jnp.float32)                      # (B, C)
    per_sample_ce = -jnp.sum(one_hot * log_p, axis=-1, keepdims=True)     # (B, 1)
    base_loss = jnp.sum(per_sample_ce, axis=0, keepdims=True) * (1.0 / B)  # (1, 1)

    # ---- soft distillation: KL(log_softmax(d/T) || log_softmax(t/T)) ---------
    inv_t = 1.0 / tau
    d_t = d * inv_t
    t_t = t * inv_t
    m_d = jnp.max(d_t, axis=-1, keepdims=True)
    log_ps = d_t - (m_d + jnp.log(jnp.sum(jnp.exp(d_t - m_d), axis=-1, keepdims=True)))
    m_t = jnp.max(t_t, axis=-1, keepdims=True)
    log_pt = t_t - (m_t + jnp.log(jnp.sum(jnp.exp(t_t - m_t), axis=-1, keepdims=True)))
    # F.kl_div(log_ps, log_pt, reduction='sum', log_target=True)
    kl_elems = jnp.exp(log_pt) * (log_pt - log_ps)                        # (B, C)
    kl_rows = jnp.sum(kl_elems, axis=-1, keepdims=True)                   # (B, 1)
    kl_sum = jnp.sum(kl_rows, axis=0, keepdims=True)                      # (1, 1)
    distill_loss = kl_sum * (tau * tau / (B * C))                         # (1, 1)

    base_scaled = base_loss * (1.0 - alpha)
    dist_scaled = distill_loss * alpha
    loss_ref[...] = base_scaled + dist_scaled
    base_ref[...] = base_scaled
    dist_ref[...] = dist_scaled


def distillation_loss_soft(outputs, outputs_kd, teacher_outputs, labels,
                           *, alpha, tau):
    """Pallas-backed DistillationLoss.forward for distillation_type='soft'.

    outputs / outputs_kd / teacher_outputs: (B, C) float32 logits.
    labels: (B,) integer class labels.
    Returns (loss, base_loss*(1-alpha), distillation_loss*alpha) as f32 scalars.
    """
    outputs = outputs.astype(jnp.float32)
    outputs_kd = outputs_kd.astype(jnp.float32)
    # Mirrors `with torch.no_grad(): teacher_outputs = self.teacher_model(inputs)`
    teacher_outputs = jax.lax.stop_gradient(teacher_outputs.astype(jnp.float32))

    B, C = outputs.shape
    labels2d = labels.astype(jnp.int32).reshape(B, 1)

    full = lambda a: pl.BlockSpec(a.shape, lambda: (0,) * a.ndim)
    scalar_out = jax.ShapeDtypeStruct((1, 1), jnp.float32)
    kernel = functools.partial(_distill_soft_kernel, float(alpha), float(tau))

    loss, base_s, dist_s = pl.pallas_call(
        kernel,
        out_shape=(scalar_out, scalar_out, scalar_out),
        in_specs=[full(outputs), full(outputs_kd), full(teacher_outputs),
                  full(labels2d)],
        out_specs=(pl.BlockSpec((1, 1), lambda: (0, 0)),) * 3,
    )(outputs, outputs_kd, teacher_outputs, labels2d)

    return loss[0, 0], base_s[0, 0], dist_s[0, 0]


def distillation_loss_reference(outputs, outputs_kd, teacher_outputs, labels,
                                *, alpha, tau):
    """Pure-JAX reference of the torch forward ('soft' branch, unweighted)."""
    B, C = outputs.shape
    log_p = jax.nn.log_softmax(outputs.astype(jnp.float32), axis=-1)
    picked = jnp.take_along_axis(log_p, labels.astype(jnp.int32)[:, None], axis=-1)
    base_loss = -jnp.mean(picked)

    T = tau
    log_pt = jax.nn.log_softmax(teacher_outputs.astype(jnp.float32) / T, axis=-1)
    log_ps = jax.nn.log_softmax(outputs_kd.astype(jnp.float32) / T, axis=-1)
    kl = jnp.sum(jnp.exp(log_pt) * (log_pt - log_ps))
    distill = kl * (T * T) / (B * C)

    return (base_loss * (1 - alpha) + distill * alpha,
            base_loss * (1 - alpha),
            distill * alpha)


if __name__ == "__main__":
    key = jax.random.PRNGKey(0)
    k_out, k_kd, k_teach, k_lab = jax.random.split(key, 4)

    B, C = 8, 128          # small batch of logits; class axis lane-dense
    alpha, tau = 0.5, 3.0  # typical DeiT soft-distillation hyperparameters

    outputs = jax.random.normal(k_out, (B, C), jnp.float32)
    outputs_kd = jax.random.normal(k_kd, (B, C), jnp.float32)
    teacher_outputs = jax.random.normal(k_teach, (B, C), jnp.float32)
    labels = jax.random.randint(k_lab, (B,), 0, C, dtype=jnp.int32)

    loss, base_s, dist_s = distillation_loss_soft(
        outputs, outputs_kd, teacher_outputs, labels, alpha=alpha, tau=tau)
    loss = jax.block_until_ready(loss)

    ref_loss, ref_base, ref_dist = distillation_loss_reference(
        outputs, outputs_kd, teacher_outputs, labels, alpha=alpha, tau=tau)

    assert loss.shape == (), loss.shape
    assert jnp.allclose(loss, ref_loss, atol=1e-5, rtol=1e-5), (loss, ref_loss)
    assert jnp.allclose(base_s, ref_base, atol=1e-5, rtol=1e-5), (base_s, ref_base)
    assert jnp.allclose(dist_s, ref_dist, atol=1e-5, rtol=1e-5), (dist_s, ref_dist)

    print("KERNEL_OK")
</pallas_src>

<mosaic_0001>
module attributes {stable_mosaic.version = 11 : i64} {
  func.func @_distill_soft_kernel(%arg0: memref<8x128xf32, #tpu.memory_space<vmem>>, %arg1: memref<8x128xf32, #tpu.memory_space<vmem>>, %arg2: memref<8x128xf32, #tpu.memory_space<vmem>>, %arg3: memref<8x1xi32, #tpu.memory_space<vmem>>, %arg4: memref<1x1xf32, #tpu.memory_space<vmem>>, %arg5: memref<1x1xf32, #tpu.memory_space<vmem>>, %arg6: memref<1x1xf32, #tpu.memory_space<vmem>>) attributes {dimension_semantics = [], scalar_prefetch = 0 : i64, scratch_operands = 0 : i64, tpu.core_type = #tpu.core_type<tc>} {
    %c0 = arith.constant 0 : index
    %c0_0 = arith.constant 0 : index
    %0 = vector.load %arg0[%c0, %c0_0] : memref<8x128xf32, #tpu.memory_space<vmem>>, vector<8x128xf32>
    %c0_1 = arith.constant 0 : index
    %c0_2 = arith.constant 0 : index
    %1 = vector.load %arg1[%c0_1, %c0_2] : memref<8x128xf32, #tpu.memory_space<vmem>>, vector<8x128xf32>
    %c0_3 = arith.constant 0 : index
    %c0_4 = arith.constant 0 : index
    %2 = vector.load %arg2[%c0_3, %c0_4] : memref<8x128xf32, #tpu.memory_space<vmem>>, vector<8x128xf32>
    %c0_5 = arith.constant 0 : index
    %c0_6 = arith.constant 0 : index
    %3 = vector.load %arg3[%c0_5, %c0_6] : memref<8x1xi32, #tpu.memory_space<vmem>>, vector<8x1xi32>
    %cst = arith.constant dense<0xFF800000> : vector<8xf32>
    %4 = vector.multi_reduction <maximumf>, %0, %cst [1] : vector<8x128xf32> to vector<8xf32>
    %5 = vector.shape_cast %4 : vector<8xf32> to vector<8x1xf32>
    %6 = vector.broadcast %5 : vector<8x1xf32> to vector<8x128xf32>
    %7 = arith.subf %0, %6 : vector<8x128xf32>
    %8 = math.exp %7 : vector<8x128xf32>
    %cst_7 = arith.constant dense<0.000000e+00> : vector<8xf32>
    %9 = vector.multi_reduction <add>, %8, %cst_7 [1] : vector<8x128xf32> to vector<8xf32>
    %10 = vector.shape_cast %9 : vector<8xf32> to vector<8x1xf32>
    %11 = math.log %10 : vector<8x1xf32>
    %12 = arith.addf %5, %11 : vector<8x1xf32>
    %13 = vector.broadcast %12 : vector<8x1xf32> to vector<8x128xf32>
    %14 = arith.subf %0, %13 : vector<8x128xf32>
    %15 = tpu.iota {dimensions = array<i32: 1>} : vector<8x128xi32>
    %16 = vector.broadcast %3 : vector<8x1xi32> to vector<8x128xi32>
    %17 = arith.cmpi eq, %15, %16 : vector<8x128xi32>
    %18 = arith.extui %17 : vector<8x128xi1> to vector<8x128xi32>
    %19 = arith.sitofp %18 : vector<8x128xi32> to vector<8x128xf32>
    %20 = arith.mulf %19, %14 : vector<8x128xf32>
    %cst_8 = arith.constant dense<0.000000e+00> : vector<8xf32>
    %21 = vector.multi_reduction <add>, %20, %cst_8 [1] : vector<8x128xf32> to vector<8xf32>
    %22 = vector.shape_cast %21 : vector<8xf32> to vector<8x1xf32>
    %cst_9 = arith.constant 0.000000e+00 : f32
    %23 = vector.broadcast %cst_9 : f32 to vector<8x1xf32>
    %24 = arith.subf %23, %22 : vector<8x1xf32>
    %cst_10 = arith.constant dense<0.000000e+00> : vector<1xf32>
    %25 = vector.multi_reduction <add>, %24, %cst_10 [0] : vector<8x1xf32> to vector<1xf32>
    %26 = vector.shape_cast %25 : vector<1xf32> to vector<1x1xf32>
    %cst_11 = arith.constant 1.250000e-01 : f32
    %27 = vector.broadcast %cst_11 : f32 to vector<1x1xf32>
    %28 = arith.mulf %26, %27 : vector<1x1xf32>
    %cst_12 = arith.constant 0.333333343 : f32
    %29 = vector.broadcast %cst_12 : f32 to vector<8x128xf32>
    %30 = arith.mulf %1, %29 : vector<8x128xf32>
    %cst_13 = arith.constant 0.333333343 : f32
    %31 = vector.broadcast %cst_13 : f32 to vector<8x128xf32>
    %32 = arith.mulf %2, %31 : vector<8x128xf32>
    %cst_14 = arith.constant dense<0xFF800000> : vector<8xf32>
    %33 = vector.multi_reduction <maximumf>, %30, %cst_14 [1] : vector<8x128xf32> to vector<8xf32>
    %34 = vector.shape_cast %33 : vector<8xf32> to vector<8x1xf32>
    %35 = vector.broadcast %34 : vector<8x1xf32> to vector<8x128xf32>
    %36 = arith.subf %30, %35 : vector<8x128xf32>
    %37 = math.exp %36 : vector<8x128xf32>
    %cst_15 = arith.constant dense<0.000000e+00> : vector<8xf32>
    %38 = vector.multi_reduction <add>, %37, %cst_15 [1] : vector<8x128xf32> to vector<8xf32>
    %39 = vector.shape_cast %38 : vector<8xf32> to vector<8x1xf32>
    %40 = math.log %39 : vector<8x1xf32>
    %41 = arith.addf %34, %40 : vector<8x1xf32>
    %42 = vector.broadcast %41 : vector<8x1xf32> to vector<8x128xf32>
    %43 = arith.subf %30, %42 : vector<8x128xf32>
    %cst_16 = arith.constant dense<0xFF800000> : vector<8xf32>
    %44 = vector.multi_reduction <maximumf>, %32, %cst_16 [1] : vector<8x128xf32> to vector<8xf32>
    %45 = vector.shape_cast %44 : vector<8xf32> to vector<8x1xf32>
    %46 = vector.broadcast %45 : vector<8x1xf32> to vector<8x128xf32>
    %47 = arith.subf %32, %46 : vector<8x128xf32>
    %48 = math.exp %47 : vector<8x128xf32>
    %cst_17 = arith.constant dense<0.000000e+00> : vector<8xf32>
    %49 = vector.multi_reduction <add>, %48, %cst_17 [1] : vector<8x128xf32> to vector<8xf32>
    %50 = vector.shape_cast %49 : vector<8xf32> to vector<8x1xf32>
    %51 = math.log %50 : vector<8x1xf32>
    %52 = arith.addf %45, %51 : vector<8x1xf32>
    %53 = vector.broadcast %52 : vector<8x1xf32> to vector<8x128xf32>
    %54 = arith.subf %32, %53 : vector<8x128xf32>
    %55 = math.exp %54 : vector<8x128xf32>
    %56 = arith.subf %54, %43 : vector<8x128xf32>
    %57 = arith.mulf %55, %56 : vector<8x128xf32>
    %cst_18 = arith.constant dense<0.000000e+00> : vector<8xf32>
    %58 = vector.multi_reduction <add>, %57, %cst_18 [1] : vector<8x128xf32> to vector<8xf32>
    %59 = vector.shape_cast %58 : vector<8xf32> to vector<8x1xf32>
    %cst_19 = arith.constant dense<0.000000e+00> : vector<1xf32>
    %60 = vector.multi_reduction <add>, %59, %cst_19 [0] : vector<8x1xf32> to vector<1xf32>
    %61 = vector.shape_cast %60 : vector<1xf32> to vector<1x1xf32>
    %cst_20 = arith.constant 0.0087890625 : f32
    %62 = vector.broadcast %cst_20 : f32 to vector<1x1xf32>
    %63 = arith.mulf %61, %62 : vector<1x1xf32>
    %cst_21 = arith.constant 5.000000e-01 : f32
    %64 = vector.broadcast %cst_21 : f32 to vector<1x1xf32>
    %65 = arith.mulf %28, %64 : vector<1x1xf32>
    %cst_22 = arith.constant 5.000000e-01 : f32
    %66 = vector.broadcast %cst_22 : f32 to vector<1x1xf32>
    %67 = arith.mulf %63, %66 : vector<1x1xf32>
    %68 = arith.addf %65, %67 : vector<1x1xf32>
    %c0_23 = arith.constant 0 : index
    %c0_24 = arith.constant 0 : index
    %69 = vector.load %arg4[%c0_23, %c0_24] : memref<1x1xf32, #tpu.memory_space<vmem>>, vector<1x1xf32>
    tpu.vector_store %arg4[%c0_23, %c0_24], %68 {strides = array<i32>} : memref<1x1xf32, #tpu.memory_space<vmem>>, vector<1x1xf32>,
    %c0_25 = arith.constant 0 : index
    %c0_26 = arith.constant 0 : index
    %70 = vector.load %arg5[%c0_25, %c0_26] : memref<1x1xf32, #tpu.memory_space<vmem>>, vector<1x1xf32>
    tpu.vector_store %arg5[%c0_25, %c0_26], %65 {strides = array<i32>} : memref<1x1xf32, #tpu.memory_space<vmem>>, vector<1x1xf32>,
    %c0_27 = arith.constant 0 : index
    %c0_28 = arith.constant 0 : index
    %71 = vector.load %arg6[%c0_27, %c0_28] : memref<1x1xf32, #tpu.memory_space<vmem>>, vector<1x1xf32>
    tpu.vector_store %arg6[%c0_27, %c0_28], %67 {strides = array<i32>} : memref<1x1xf32, #tpu.memory_space<vmem>>, vector<1x1xf32>,
    return
  }
}

</mosaic_0001>

<llo_original>
// kernel: tpu_custom_call.1
$region0: #{tpu_custom_call.1}
  #allocation0 [shape = 'u32[]', space=smem, size = 0x4, offset = 0x4, fixed_abs, tag = 'smem constant byte address 0x4 - core index']
  #allocation1 [shape = 'u32[144,128]{1,0:T(1,128)}', space=vmem, size = 0x12000, scoped, tag = 'internal scratch']
  %s0 = inlined_call_operand.vmem [shape: f32[8,128], index: 0, kind: input, shape index: {}]
  %s1 = inlined_call_operand.hbm [shape: f32[8,128], index: 1, kind: input, shape index: {}]
  %s2 = inlined_call_operand.vmem [shape: f32[8,128], index: 2, kind: input, shape index: {}]
  %s3 = inlined_call_operand.vmem [shape: s32[8,1], index: 3, kind: input, shape index: {}]
  %s4 = inlined_call_operand.hbm [shape: f32[1,1], index: 4, kind: output, shape index: {0}]
  %s5 = inlined_call_operand.hbm [shape: f32[1,1], index: 5, kind: output, shape index: {1}]
  %s6 = inlined_call_operand.hbm [shape: f32[1,1], index: 6, kind: output, shape index: {2}]
  %7 = xla_tuple %s4, %s5, %s6
  %s8 = sld [smem:[#allocation0]]
  $region46: #{tpu_custom_call.1} parent=0
    _
  %s10 = ssub.s32 1, %s8
  %s11 = scalar_select 0, %s10, %s8
  $region1: #{tpu_custom_call.1} parent=0
    #allocation2 [shape = 'u8[4096]{0}', space=vmem, size = 0x1000, scoped, tag = 'input window, operand 1, single buffered']
    #allocation3 [shape = 's32[1]{0}', space=sflag, size = 0x4, scoped, tag = 'scoped memory for tpu_custom_call.1']
    #allocation4 [shape = 's32[1]{0}', space=sflag, size = 0x4, scoped, tag = 'scoped memory for tpu_custom_call.1']
    #allocation5 [shape = 'u8[512]{0}', space=vmem, size = 0x400, scoped, tag = 'output window, operand 0, single buffered']
    #allocation6 [shape = 'u8[512]{0}', space=vmem, size = 0x400, scoped, tag = 'output window, operand 1, single buffered']
    #allocation7 [shape = 's32[1]{0}', space=sflag, size = 0x4, scoped, tag = 'scoped memory for tpu_custom_call.1']
    #allocation8 [shape = 'u8[512]{0}', space=vmem, size = 0x400, scoped, tag = 'output window, operand 2, single buffered']
    %12 = vsyncpa [#allocation3], 0
    %13 = vsyncpa [#allocation4], 0
    %14 = vsyncpa [#allocation7], 0
    // Predicated region
    $region2: #{tpu_custom_call.1} parent=1 // pred_check
      _
    $region3: #{tpu_custom_call.1} parent=1 // pred_check_branch
      %16 = sbr.rel (0) target = $region5
    $region4: #{tpu_custom_call.1} parent=1 // pred_region
      _
    $region5: #{tpu_custom_call.1} parent=1 // pred_fallthru
      _
    // Predicated region
    $region6: #{tpu_custom_call.1} parent=1 // pred_check
      _
    $region7: #{tpu_custom_call.1} parent=1 // pred_check_branch
      %18 = sbr.rel (0) target = $region9
    $region8: #{tpu_custom_call.1} parent=1 // pred_region
      %s20 = ssub.s32 128, 128
      %21 = vsyncadd [#allocation3], %s20
      %s23 = sshll.u32 [#allocation2], 4
      %s24 = int_to_ptr.vmem [resolvable:$true] %s23
      %26 = dma.hbm_to_vmem [thread:$0]  %s1, 128, %s24, [#allocation3]
    $region9: #{tpu_custom_call.1} parent=1 // pred_fallthru
      _
    // Predicated region
    $region10: #{tpu_custom_call.1} parent=1 // pred_check
      _
    $region11: #{tpu_custom_call.1} parent=1 // pred_check_branch
      %28 = sbr.rel (0) target = $region13
    $region12: #{tpu_custom_call.1} parent=1 // pred_region
      _
    $region13: #{tpu_custom_call.1} parent=1 // pred_fallthru
      _
    // Predicated region
    $region14: #{tpu_custom_call.1} parent=1 // pred_check
      _
    $region15: #{tpu_custom_call.1} parent=1 // pred_check_branch
      %30 = sbr.rel (0) target = $region17
    $region16: #{tpu_custom_call.1} parent=1 // pred_region
      _
    $region17: #{tpu_custom_call.1} parent=1 // pred_fallthru
      _
    // Predicated region
    $region18: #{tpu_custom_call.1} parent=1 // pred_check
      _
    $region19: #{tpu_custom_call.1} parent=1 // pred_check_branch
      %32 = sbr.rel (0) target = $region21
    $region20: #{tpu_custom_call.1} parent=1 // pred_region
      %33 = dma.done [#allocation3], 128
    $region21: #{tpu_custom_call.1} parent=1 // pred_fallthru
      _
    %v34 = vld [vmem:[%s0] sm:$0xff]
    %v35 = vld [vmem:[#allocation2] sm:$0xff]
    %v36 = vld [vmem:[%s2] sm:$0xff]
    %v37 = vld [vmem:[%s3] sm:$0xff]
    %38 = vmax.xlane.f32.xlu0 %v34
    %v39 = vpop.xlane.xlu0 %38
    %v40 = vsub.f32 %v34, %v39
    %v41 = vmul.f32 %v40, 1.442695
    %v42 = vpow.pop %v41
    %43 = vadd.xlane.f32.xlu0 %v42
    %v44 = vpop.xlane.xlu0 %43
    %v45 = vlog2.pop %v44
    %v46 = vmul.f32 %v45, 0.6931472
    %v47 = vadd.f32 %v39, %v46
    %v48 = vsub.f32 %v34, %v47
    %v49 = vlaneseq
    %v50 = vand.u32 %v49, 127
    %51 = vset.pattern.permute.xlu0 0
    %52 = vperm.xlu0 %51, %v37
    %v53 = vpop.permute.xlu0 %52
    %vm54 = vcmp.eq.s32.totalorder %v50, %v53
    %v55 = vsel %vm54, 1, 0
    %v56 = vcvt.s32.f32 %v55
    %v57 = vmul.f32 %v56, %v48
    %58 = vadd.xlane.f32.xlu0 %v57
    %v59 = vpop.xlane.xlu0 %58
    %v60 = vsub.f32 0.0, %v59
    %v61 = vrot.slane %v60, 4
    %v62 = vadd.f32 %v60, %v61
    %v63 = vrot.slane %v62, 2
    %v64 = vadd.f32 %v62, %v63
    %v65 = vrot.slane %v64, 1
    %v66 = vadd.f32 %v64, %v65
    %v67 = vmul.f32 %v66, 0.125
    %v68 = vmul.f32 %v35, 0.33333334
    %v69 = vmul.f32 %v36, 0.33333334
    %70 = vmax.xlane.f32.xlu0 %v68
    %v71 = vpop.xlane.xlu0 %70
    %v72 = vsub.f32 %v68, %v71
    %v73 = vmul.f32 %v72, 1.442695
    %v74 = vpow.pop %v73
    %75 = vadd.xlane.f32.xlu0 %v74
    %v76 = vpop.xlane.xlu0 %75
    %v77 = vlog2.pop %v76
    %v78 = vmul.f32 %v77, 0.6931472
    %v79 = vadd.f32 %v71, %v78
    %v80 = vsub.f32 %v68, %v79
    %81 = vmax.xlane.f32.xlu0 %v69
    %v82 = vpop.xlane.xlu0 %81
    %v83 = vsub.f32 %v69, %v82
    %v84 = vmul.f32 %v83, 1.442695
    %v85 = vpow.pop %v84
    %86 = vadd.xlane.f32.xlu0 %v85
    %v87 = vpop.xlane.xlu0 %86
    %v88 = vlog2.pop %v87
    %v89 = vmul.f32 %v88, 0.6931472
    %v90 = vadd.f32 %v82, %v89
    %v91 = vsub.f32 %v69, %v90
    %v92 = vmul.f32 %v91, 1.442695
    %v93 = vpow.pop %v92
    %v94 = vsub.f32 %v91, %v80
    %v95 = vmul.f32 %v93, %v94
    %96 = vadd.xlane.f32.xlu0 %v95
    %v97 = vpop.xlane.xlu0 %96
    %v98 = vrot.slane %v97, 4
    %v99 = vadd.f32 %v97, %v98
    %v100 = vrot.slane %v99, 2
    %v101 = vadd.f32 %v99, %v100
    %v102 = vrot.slane %v101, 1
    %v103 = vadd.f32 %v101, %v102
    %v104 = vmul.f32 %v103, 0.0087890625
    %v105 = vmul.f32 %v67, 0.5
    %v106 = vmul.f32 %v104, 0.5
    %v107 = vadd.f32 %v105, %v106
    %vm108 = vcmask 0
    %109 = vst.msk [vmem:[#allocation5] sm:$0x1] %vm108, %v107
    %110 = vst.msk [vmem:[#allocation6] sm:$0x1] %vm108, %v105
    %111 = vst.msk [vmem:[#allocation8] sm:$0x1] %vm108, %v106
    // Predicated region
    $region22: #{tpu_custom_call.1} parent=1 // pred_check
      _
    $region23: #{tpu_custom_call.1} parent=1 // pred_check_branch
      %113 = sbr.rel (0) target = $region25
    $region24: #{tpu_custom_call.1} parent=1 // pred_region
      %s115 = ssub.s32 16, 16
      %116 = vsyncadd [#allocation4], %s115
      %s118 = sshll.u32 [#allocation5], 4
      %s119 = int_to_ptr.vmem [resolvable:$true] %s118
      %121 = dma.vmem_to_hbm [thread:$0]  %s119, 16, %s4, [#allocation4]
    $region25: #{tpu_custom_call.1} parent=1 // pred_fallthru
      _
    // Predicated region
    $region26: #{tpu_custom_call.1} parent=1 // pred_check
      _
    $region27: #{tpu_custom_call.1} parent=1 // pred_check_branch
      %123 = sbr.rel (0) target = $region29
    $region28: #{tpu_custom_call.1} parent=1 // pred_region
      %s125 = ssub.s32 16, 16
      %126 = vsyncadd [#allocation7], %s125
      %s128 = sshll.u32 [#allocation6], 4
      %s129 = int_to_ptr.vmem [resolvable:$true] %s128
      %131 = dma.vmem_to_hbm [thread:$0]  %s129, 16, %s5, [#allocation7]
    $region29: #{tpu_custom_call.1} parent=1 // pred_fallthru
      _
    // Predicated region
    $region30: #{tpu_custom_call.1} parent=1 // pred_check
      _
    $region31: #{tpu_custom_call.1} parent=1 // pred_check_branch
      %133 = sbr.rel (0) target = $region33
    $region32: #{tpu_custom_call.1} parent=1 // pred_region
      %s135 = ssub.s32 16, 16
      %136 = vsyncadd [#allocation7], %s135
      %s138 = sshll.u32 [#allocation8], 4
      %s139 = int_to_ptr.vmem [resolvable:$true] %s138
      %141 = dma.vmem_to_hbm [thread:$0]  %s139, 16, %s6, [#allocation7]
    $region33: #{tpu_custom_call.1} parent=1 // pred_fallthru
      _
    // Predicated region
    $region34: #{tpu_custom_call.1} parent=1 // pred_check
      _
    $region35: #{tpu_custom_call.1} parent=1 // pred_check_branch
      %143 = sbr.rel (0) target = $region37
    $region36: #{tpu_custom_call.1} parent=1 // pred_region
      %144 = dma.done [#allocation4], 16
    $region37: #{tpu_custom_call.1} parent=1 // pred_fallthru
      _
    // Predicated region
    $region38: #{tpu_custom_call.1} parent=1 // pred_check
      _
    $region39: #{tpu_custom_call.1} parent=1 // pred_check_branch
      %146 = sbr.rel (0) target = $region41
    $region40: #{tpu_custom_call.1} parent=1 // pred_region
      %147 = dma.done [#allocation7], 16
    $region41: #{tpu_custom_call.1} parent=1 // pred_fallthru
      _
    // Predicated region
    $region42: #{tpu_custom_call.1} parent=1 // pred_check
      _
    $region43: #{tpu_custom_call.1} parent=1 // pred_check_branch
      %149 = sbr.rel (0) target = $region45
    $region44: #{tpu_custom_call.1} parent=1 // pred_region
      %150 = dma.done [#allocation7], 16
    $region45: #{tpu_custom_call.1} parent=1 // pred_fallthru
      _
    %151 = vsyncpa [#allocation3], 1
    %152 = vsyncpa [#allocation4], 1
    %153 = vsyncpa [#allocation7], 1

</llo_original>
